<compile_context>
chip_gen: v5e
topology: v5e:2x2
jax: 0.10.0
libtpu: 0.0.40
codegen_flags: <defaults>
</compile_context>

<pallas_src>
import functools

import jax
import jax.numpy as jnp
from jax import lax
from jax.experimental import pallas as pl
from jax.experimental.pallas import tpu as pltpu


def _prelu(x, alpha):
    # alpha broadcasts against x (channels live on the sublane axis)
    return jnp.where(x >= 0, x, alpha * x)


def _shift_lanes(x, s):
    """result[..., m] = x[..., m - s]; zero where m - s falls outside [0, M)."""
    if s == 0:
        return x
    m = x.shape[-1]
    pad = jnp.zeros(x.shape[:-1] + (abs(s),), x.dtype)
    if s > 0:
        return jnp.concatenate([pad, x[..., : m - s]], axis=-1)
    return jnp.concatenate([x[..., -s:], pad], axis=-1)


def downsample_kernel(xs_ref, masks_ref, a0_ref, w1_ref, b1_ref, a1_ref,
                      w2_ref, b2_ref, out_ref, *, W1, precision):
    # xs_ref   : (bt, 4*C0, M)  space-to-depth input, M = H1*W1 flattened in lanes
    # masks_ref: (4, M)         f32 border masks: [j>0, j<W1-1, i>0, i<H1-1]
    # a0_ref   : (4*C0, 1)      PReLU#0 alpha in s2d channel layout
    # w1_ref   : (C1, 16*C0)    folded stride-2 weights, K order = (dh,dw,a,b,c)
    # b1_ref   : (C1, 1)   a1_ref: (C1, 1)
    # w2_ref   : (C2, 9*C1)     3x3 weights, K order = (dh,dw,cin)
    # b2_ref   : (C2, 1)
    # out_ref  : (bt, C2, M)    channels-in-sublanes output (NCHW after reshape)
    bt = xs_ref.shape[0]
    f32 = jnp.float32

    m_left = masks_ref[0:1, :]    # zero where j == 0
    m_right = masks_ref[1:2, :]   # zero where j == W1-1
    m_top = masks_ref[2:3, :]     # zero where i == 0
    m_bot = masks_ref[3:4, :]     # zero where i == H1-1

    a0 = a0_ref[...]
    w1 = w1_ref[...]
    b1 = b1_ref[...]
    a1 = a1_ref[...]
    w2 = w2_ref[...]
    b2 = b2_ref[...]

    for b in range(bt):
        # ---- PReLU #0 (per s2d channel) ------------------------------------
        x = _prelu(xs_ref[b], a0)                               # (4*C0, M)

        # ---- Conv #1: 3x3/s2/p1 == 2x2/s1 conv over s2d cells, one matmul --
        # tap (dh, dw) holds the s2d cell at (i-1+dh, j-1+dw); out-of-image
        # cells are exact zeros (zero-filled lane shift + border-mask mul),
        # matching the conv's zero padding (PReLU(0) == 0).
        t00 = _shift_lanes(x, W1 + 1) * m_left    # cell (i-1, j-1)
        t01 = _shift_lanes(x, W1)                 # cell (i-1, j  )
        t10 = _shift_lanes(x, 1) * m_left         # cell (i  , j-1)
        t11 = x                                   # cell (i  , j  )
        xcol1 = jnp.concatenate([t00, t01, t10, t11], axis=0)   # (16*C0, M)
        y1 = jnp.dot(w1, xcol1, preferred_element_type=f32,
                     precision=precision) + b1                  # (C1, M)

        # ---- PReLU #1 -------------------------------------------------------
        h = _prelu(y1, a1)

        # ---- Conv #2: k3/s1/p1, one matmul ----------------------------------
        taps2 = []
        for dh in range(3):
            for dw in range(3):
                t = _shift_lanes(h, (1 - dh) * W1 + (1 - dw))
                if dh == 0:
                    t = t * m_top
                elif dh == 2:
                    t = t * m_bot
                if dw == 0:
                    t = t * m_left
                elif dw == 2:
                    t = t * m_right
                taps2.append(t)
        xcol2 = jnp.concatenate(taps2, axis=0)                  # (9*C1, M)
        y2 = jnp.dot(w2, xcol2, preferred_element_type=f32,
                     precision=precision) + b2                  # (C2, M)

        out_ref[b] = y2.astype(out_ref.dtype)


def downsample_pallas(x_nchw, params, *, batch_tile=1,
                      precision=lax.Precision.HIGHEST,
                      vmem_limit_bytes=None):
    """x_nchw: (N, C0, H, W) float32. Returns (N, C2, H//2, W//2)."""
    a0, w1, b1, a1, w2, b2 = params
    N, C0, H, W = x_nchw.shape
    assert H % 2 == 0 and W % 2 == 0, "even spatial dims assumed"
    C1 = w1.shape[3]
    C2 = w2.shape[3]
    H1, W1 = H // 2, W // 2
    M = H1 * W1
    C0S = 4 * C0

    bt = batch_tile
    assert N % bt == 0

    # ---- layout glue: NCHW -> space-to-depth, channels-in-sublanes:
    #   xs[n, (a*2+b)*C0 + c, i*W1 + j] = x[n, c, 2i+a, 2j+b]
    xs = x_nchw.astype(jnp.float32).reshape(N, C0, H1, 2, W1, 2)
    xs = jnp.transpose(xs, (0, 3, 5, 1, 2, 4)).reshape(N, C0S, M)

    # ---- compile-time border masks, passed as one tiny (4, M) input
    jj = jnp.arange(M, dtype=jnp.int32) % W1
    ii = jnp.arange(M, dtype=jnp.int32) // W1
    masks = jnp.stack([jj > 0, jj < W1 - 1, ii > 0, ii < H1 - 1]
                      ).astype(jnp.float32)                     # (4, M)

    # ---- fold the 3x3/stride-2 weights into 2x2/stride-1 weights over the
    # s2d channels; K order = (dh, dw, a, b, c).  Zero where the original tap
    # index would be -1 (those taps fall on never-read padding).
    w1p = jnp.pad(w1, ((1, 0), (1, 0), (0, 0), (0, 0)))         # (4,4,C0,C1)
    w1s = w1p.reshape(2, 2, 2, 2, C0, C1)                       # (dh,a,dw,b,c,o)
    w1k = jnp.transpose(w1s, (5, 0, 2, 1, 3, 4)).reshape(C1, 16 * C0)
    # conv #2 weights: K order = (dh, dw, cin), transposed to (C2, 9*C1).
    w2k = jnp.transpose(w2.reshape(9 * C1, C2), (1, 0))

    a0k = jnp.tile(a0, 4).reshape(C0S, 1)    # PReLU#0 alpha in s2d layout
    b1k = b1.reshape(C1, 1)
    a1k = a1.reshape(C1, 1)
    b2k = b2.reshape(C2, 1)

    cp_kwargs = dict(dimension_semantics=("parallel",))
    if vmem_limit_bytes is not None:
        # raise toward 64-100 MiB on v5e/v6e; keep <= ~48 MiB on v7x.
        cp_kwargs["vmem_limit_bytes"] = vmem_limit_bytes

    out = pl.pallas_call(
        functools.partial(downsample_kernel, W1=W1, precision=precision),
        out_shape=jax.ShapeDtypeStruct((N, C2, M), jnp.float32),
        grid=(N // bt,),
        in_specs=[
            pl.BlockSpec((bt, C0S, M), lambda n: (n, 0, 0)),
            pl.BlockSpec((4, M), lambda n: (0, 0)),
            pl.BlockSpec((C0S, 1), lambda n: (0, 0)),
            pl.BlockSpec((C1, 16 * C0), lambda n: (0, 0)),
            pl.BlockSpec((C1, 1), lambda n: (0, 0)),
            pl.BlockSpec((C1, 1), lambda n: (0, 0)),
            pl.BlockSpec((C2, 9 * C1), lambda n: (0, 0)),
            pl.BlockSpec((C2, 1), lambda n: (0, 0)),
        ],
        out_specs=pl.BlockSpec((bt, C2, M), lambda n: (n, 0, 0)),
        compiler_params=pltpu.CompilerParams(**cp_kwargs),
    )(xs, masks, a0k, w1k, b1k, a1k, w2k, b2k)

    # output is already channel-major: just split H1*W1 back into (H1, W1).
    return out.reshape(N, C2, H1, W1)


def downsample_ref(x_nchw, params):
    """Pure-JAX reference of the same forward pass (true-f32 convs)."""
    a0, w1, b1, a1, w2, b2 = params
    x = jnp.transpose(x_nchw, (0, 2, 3, 1)).astype(jnp.float32)
    dn = ("NHWC", "HWIO", "NHWC")
    y = _prelu(x, a0)
    y = lax.conv_general_dilated(y, w1, (2, 2), [(1, 1), (1, 1)],
                                 dimension_numbers=dn,
                                 precision=lax.Precision.HIGHEST) + b1
    y = _prelu(y, a1)
    y = lax.conv_general_dilated(y, w2, (1, 1), [(1, 1), (1, 1)],
                                 dimension_numbers=dn,
                                 precision=lax.Precision.HIGHEST) + b2
    return jnp.transpose(y, (0, 3, 1, 2))


def make_params(key, c0, c1, c2):
    """Deterministic synthetic parameters (PReLU alphas init=0.25, conv W/b)."""
    k1, k2, k3, k4 = jax.random.split(key, 4)
    a0 = jnp.full((c0,), 0.25, jnp.float32)               # PReLU init=0.25
    a1 = jnp.full((c1,), 0.25, jnp.float32)
    w1 = 0.1 * jax.random.normal(k1, (3, 3, c0, c1), jnp.float32)  # HWIO
    b1 = 0.01 * jax.random.normal(k2, (c1,), jnp.float32)
    w2 = 0.1 * jax.random.normal(k3, (3, 3, c1, c2), jnp.float32)  # HWIO
    b2 = 0.01 * jax.random.normal(k4, (c2,), jnp.float32)
    return (a0, w1, b1, a1, w2, b2)


if __name__ == "__main__":
    key = jax.random.PRNGKey(0)
    kx, kp = jax.random.split(key)

    # small NCHW input like the module expects: intChannels ~ [4, 8, 8]
    N, C0, H, W = 2, 4, 16, 16
    C1, C2 = 8, 8
    x = jax.random.normal(kx, (N, C0, H, W), jnp.float32)
    params = make_params(kp, C0, C1, C2)

    out = jax.block_until_ready(downsample_pallas(x, params))
    ref = jax.block_until_ready(downsample_ref(x, params))

    assert out.shape == (N, C2, H // 2, W // 2), out.shape
    assert jnp.allclose(out, ref, atol=1e-4, rtol=1e-4), \
        float(jnp.max(jnp.abs(out - ref)))

    print("KERNEL_OK")
</pallas_src>

<mosaic_0001>
module attributes {stable_mosaic.version = 11 : i64} {
  func.func @downsample_kernel(%arg0: i32, %arg1: memref<1x16x64xf32, #tpu.memory_space<vmem>>, %arg2: memref<4x64xf32, #tpu.memory_space<vmem>>, %arg3: memref<16x1xf32, #tpu.memory_space<vmem>>, %arg4: memref<8x64xf32, #tpu.memory_space<vmem>>, %arg5: memref<8x1xf32, #tpu.memory_space<vmem>>, %arg6: memref<8x1xf32, #tpu.memory_space<vmem>>, %arg7: memref<8x72xf32, #tpu.memory_space<vmem>>, %arg8: memref<8x1xf32, #tpu.memory_space<vmem>>, %arg9: memref<1x8x64xf32, #tpu.memory_space<vmem>>) attributes {dimension_semantics = [#tpu.dimension_semantics<parallel>], iteration_bounds = array<i64: 2>, scalar_prefetch = 0 : i64, scratch_operands = 0 : i64, tpu.core_type = #tpu.core_type<tc>, window_params = [{transform_indices = @transform_0, window_bounds = array<i64: 1, 16, 64>}, {pipeline_mode = #tpu.pipeline_mode<synchronous>, transform_indices = @transform_1, window_bounds = array<i64: 4, 64>}, {pipeline_mode = #tpu.pipeline_mode<synchronous>, transform_indices = @transform_2, window_bounds = array<i64: 16, 1>}, {pipeline_mode = #tpu.pipeline_mode<synchronous>, transform_indices = @transform_3, window_bounds = array<i64: 8, 64>}, {pipeline_mode = #tpu.pipeline_mode<synchronous>, transform_indices = @transform_4, window_bounds = array<i64: 8, 1>}, {pipeline_mode = #tpu.pipeline_mode<synchronous>, transform_indices = @transform_5, window_bounds = array<i64: 8, 1>}, {pipeline_mode = #tpu.pipeline_mode<synchronous>, transform_indices = @transform_6, window_bounds = array<i64: 8, 72>}, {pipeline_mode = #tpu.pipeline_mode<synchronous>, transform_indices = @transform_7, window_bounds = array<i64: 8, 1>}, {transform_indices = @transform_8, window_bounds = array<i64: 1, 8, 64>}]} {
    %c0 = arith.constant 0 : index
    %c0_0 = arith.constant 0 : index
    %0 = vector.load %arg2[%c0, %c0_0] : memref<4x64xf32, #tpu.memory_space<vmem>>, vector<1x64xf32>
    %c1 = arith.constant 1 : index
    %c0_1 = arith.constant 0 : index
    %1 = vector.load %arg2[%c1, %c0_1] : memref<4x64xf32, #tpu.memory_space<vmem>>, vector<1x64xf32>
    %c2 = arith.constant 2 : index
    %c0_2 = arith.constant 0 : index
    %2 = vector.load %arg2[%c2, %c0_2] : memref<4x64xf32, #tpu.memory_space<vmem>>, vector<1x64xf32>
    %c3 = arith.constant 3 : index
    %c0_3 = arith.constant 0 : index
    %3 = vector.load %arg2[%c3, %c0_3] : memref<4x64xf32, #tpu.memory_space<vmem>>, vector<1x64xf32>
    %c0_4 = arith.constant 0 : index
    %c0_5 = arith.constant 0 : index
    %4 = vector.load %arg3[%c0_4, %c0_5] : memref<16x1xf32, #tpu.memory_space<vmem>>, vector<16x1xf32>
    %c0_6 = arith.constant 0 : index
    %c0_7 = arith.constant 0 : index
    %5 = vector.load %arg4[%c0_6, %c0_7] : memref<8x64xf32, #tpu.memory_space<vmem>>, vector<8x64xf32>
    %c0_8 = arith.constant 0 : index
    %c0_9 = arith.constant 0 : index
    %6 = vector.load %arg5[%c0_8, %c0_9] : memref<8x1xf32, #tpu.memory_space<vmem>>, vector<8x1xf32>
    %c0_10 = arith.constant 0 : index
    %c0_11 = arith.constant 0 : index
    %7 = vector.load %arg6[%c0_10, %c0_11] : memref<8x1xf32, #tpu.memory_space<vmem>>, vector<8x1xf32>
    %c0_12 = arith.constant 0 : index
    %c0_13 = arith.constant 0 : index
    %8 = vector.load %arg7[%c0_12, %c0_13] : memref<8x72xf32, #tpu.memory_space<vmem>>, vector<8x72xf32>
    %c0_14 = arith.constant 0 : index
    %c0_15 = arith.constant 0 : index
    %9 = vector.load %arg8[%c0_14, %c0_15] : memref<8x1xf32, #tpu.memory_space<vmem>>, vector<8x1xf32>
    %c0_16 = arith.constant 0 : index
    %c0_17 = arith.constant 0 : index
    %c0_18 = arith.constant 0 : index
    %10 = vector.load %arg1[%c0_16, %c0_17, %c0_18] : memref<1x16x64xf32, #tpu.memory_space<vmem>>, vector<1x16x64xf32>
    %11 = vector.shape_cast %10 : vector<1x16x64xf32> to vector<16x64xf32>
    %cst = arith.constant 0.000000e+00 : f32
    %12 = vector.broadcast %cst : f32 to vector<16x64xf32>
    %13 = arith.cmpf oge, %11, %12 : vector<16x64xf32>
    %14 = vector.broadcast %4 : vector<16x1xf32> to vector<16x64xf32>
    %15 = arith.mulf %14, %11 : vector<16x64xf32>
    %16 = arith.select %13, %11, %15 : vector<16x64xi1>, vector<16x64xf32>
    %cst_19 = arith.constant 0.000000e+00 : f32
    %17 = vector.broadcast %cst_19 : f32 to vector<16x9xf32>
    %18 = vector.extract_strided_slice %16 {offsets = [0, 0], sizes = [16, 55], strides = [1, 1]} : vector<16x64xf32> to vector<16x55xf32>
    %19 = tpu.concatenate %17, %18 in 1 : vector<16x9xf32>, vector<16x55xf32> -> vector<16x64xf32>
    %20 = vector.broadcast %0 : vector<1x64xf32> to vector<16x64xf32>
    %21 = arith.mulf %19, %20 : vector<16x64xf32>
    %cst_20 = arith.constant 0.000000e+00 : f32
    %22 = vector.broadcast %cst_20 : f32 to vector<16x8xf32>
    %23 = vector.extract_strided_slice %16 {offsets = [0, 0], sizes = [16, 56], strides = [1, 1]} : vector<16x64xf32> to vector<16x56xf32>
    %24 = tpu.concatenate %22, %23 in 1 : vector<16x8xf32>, vector<16x56xf32> -> vector<16x64xf32>
    %cst_21 = arith.constant 0.000000e+00 : f32
    %25 = vector.broadcast %cst_21 : f32 to vector<16x1xf32>
    %26 = vector.extract_strided_slice %16 {offsets = [0, 0], sizes = [16, 63], strides = [1, 1]} : vector<16x64xf32> to vector<16x63xf32>
    %27 = tpu.concatenate %25, %26 in 1 : vector<16x1xf32>, vector<16x63xf32> -> vector<16x64xf32>
    %28 = vector.broadcast %0 : vector<1x64xf32> to vector<16x64xf32>
    %29 = arith.mulf %27, %28 : vector<16x64xf32>
    %30 = tpu.concatenate %21, %24, %29, %16 in 0 : vector<16x64xf32>, vector<16x64xf32>, vector<16x64xf32>, vector<16x64xf32> -> vector<64x64xf32>
    %cst_22 = arith.constant dense<0.000000e+00> : vector<8x64xf32>
    %31 = tpu.matmul %5, %30, %cst_22 {dimension_numbers = #tpu.dot_dimension_numbers<[1], [0], [0], [1], [0, 0, 1, 1], [], []>, precision = #tpu.contract_precision<fp32>} : vector<8x64xf32>, vector<64x64xf32>, vector<8x64xf32> -> vector<8x64xf32>
    %32 = vector.broadcast %6 : vector<8x1xf32> to vector<8x64xf32>
    %33 = arith.addf %31, %32 : vector<8x64xf32>
    %cst_23 = arith.constant 0.000000e+00 : f32
    %34 = vector.broadcast %cst_23 : f32 to vector<8x64xf32>
    %35 = arith.cmpf oge, %33, %34 : vector<8x64xf32>
    %36 = vector.broadcast %7 : vector<8x1xf32> to vector<8x64xf32>
    %37 = arith.mulf %36, %33 : vector<8x64xf32>
    %38 = arith.select %35, %33, %37 : vector<8x64xi1>, vector<8x64xf32>
    %cst_24 = arith.constant 0.000000e+00 : f32
    %39 = vector.broadcast %cst_24 : f32 to vector<8x9xf32>
    %40 = vector.extract_strided_slice %38 {offsets = [0, 0], sizes = [8, 55], strides = [1, 1]} : vector<8x64xf32> to vector<8x55xf32>
    %41 = tpu.concatenate %39, %40 in 1 : vector<8x9xf32>, vector<8x55xf32> -> vector<8x64xf32>
    %42 = vector.broadcast %2 : vector<1x64xf32> to vector<8x64xf32>
    %43 = arith.mulf %41, %42 : vector<8x64xf32>
    %44 = vector.broadcast %0 : vector<1x64xf32> to vector<8x64xf32>
    %45 = arith.mulf %43, %44 : vector<8x64xf32>
    %cst_25 = arith.constant 0.000000e+00 : f32
    %46 = vector.broadcast %cst_25 : f32 to vector<8x8xf32>
    %47 = vector.extract_strided_slice %38 {offsets = [0, 0], sizes = [8, 56], strides = [1, 1]} : vector<8x64xf32> to vector<8x56xf32>
    %48 = tpu.concatenate %46, %47 in 1 : vector<8x8xf32>, vector<8x56xf32> -> vector<8x64xf32>
    %49 = vector.broadcast %2 : vector<1x64xf32> to vector<8x64xf32>
    %50 = arith.mulf %48, %49 : vector<8x64xf32>
    %cst_26 = arith.constant 0.000000e+00 : f32
    %51 = vector.broadcast %cst_26 : f32 to vector<8x7xf32>
    %52 = vector.extract_strided_slice %38 {offsets = [0, 0], sizes = [8, 57], strides = [1, 1]} : vector<8x64xf32> to vector<8x57xf32>
    %53 = tpu.concatenate %51, %52 in 1 : vector<8x7xf32>, vector<8x57xf32> -> vector<8x64xf32>
    %54 = vector.broadcast %2 : vector<1x64xf32> to vector<8x64xf32>
    %55 = arith.mulf %53, %54 : vector<8x64xf32>
    %56 = vector.broadcast %1 : vector<1x64xf32> to vector<8x64xf32>
    %57 = arith.mulf %55, %56 : vector<8x64xf32>
    %cst_27 = arith.constant 0.000000e+00 : f32
    %58 = vector.broadcast %cst_27 : f32 to vector<8x1xf32>
    %59 = vector.extract_strided_slice %38 {offsets = [0, 0], sizes = [8, 63], strides = [1, 1]} : vector<8x64xf32> to vector<8x63xf32>
    %60 = tpu.concatenate %58, %59 in 1 : vector<8x1xf32>, vector<8x63xf32> -> vector<8x64xf32>
    %61 = vector.broadcast %0 : vector<1x64xf32> to vector<8x64xf32>
    %62 = arith.mulf %60, %61 : vector<8x64xf32>
    %cst_28 = arith.constant 0.000000e+00 : f32
    %63 = vector.broadcast %cst_28 : f32 to vector<8x1xf32>
    %64 = vector.extract_strided_slice %38 {offsets = [0, 1], sizes = [8, 63], strides = [1, 1]} : vector<8x64xf32> to vector<8x63xf32>
    %65 = tpu.concatenate %64, %63 in 1 : vector<8x63xf32>, vector<8x1xf32> -> vector<8x64xf32>
    %66 = vector.broadcast %1 : vector<1x64xf32> to vector<8x64xf32>
    %67 = arith.mulf %65, %66 : vector<8x64xf32>
    %cst_29 = arith.constant 0.000000e+00 : f32
    %68 = vector.broadcast %cst_29 : f32 to vector<8x7xf32>
    %69 = vector.extract_strided_slice %38 {offsets = [0, 7], sizes = [8, 57], strides = [1, 1]} : vector<8x64xf32> to vector<8x57xf32>
    %70 = tpu.concatenate %69, %68 in 1 : vector<8x57xf32>, vector<8x7xf32> -> vector<8x64xf32>
    %71 = vector.broadcast %3 : vector<1x64xf32> to vector<8x64xf32>
    %72 = arith.mulf %70, %71 : vector<8x64xf32>
    %73 = vector.broadcast %0 : vector<1x64xf32> to vector<8x64xf32>
    %74 = arith.mulf %72, %73 : vector<8x64xf32>
    %cst_30 = arith.constant 0.000000e+00 : f32
    %75 = vector.broadcast %cst_30 : f32 to vector<8x8xf32>
    %76 = vector.extract_strided_slice %38 {offsets = [0, 8], sizes = [8, 56], strides = [1, 1]} : vector<8x64xf32> to vector<8x56xf32>
    %77 = tpu.concatenate %76, %75 in 1 : vector<8x56xf32>, vector<8x8xf32> -> vector<8x64xf32>
    %78 = vector.broadcast %3 : vector<1x64xf32> to vector<8x64xf32>
    %79 = arith.mulf %77, %78 : vector<8x64xf32>
    %cst_31 = arith.constant 0.000000e+00 : f32
    %80 = vector.broadcast %cst_31 : f32 to vector<8x9xf32>
    %81 = vector.extract_strided_slice %38 {offsets = [0, 9], sizes = [8, 55], strides = [1, 1]} : vector<8x64xf32> to vector<8x55xf32>
    %82 = tpu.concatenate %81, %80 in 1 : vector<8x55xf32>, vector<8x9xf32> -> vector<8x64xf32>
    %83 = vector.broadcast %3 : vector<1x64xf32> to vector<8x64xf32>
    %84 = arith.mulf %82, %83 : vector<8x64xf32>
    %85 = vector.broadcast %1 : vector<1x64xf32> to vector<8x64xf32>
    %86 = arith.mulf %84, %85 : vector<8x64xf32>
    %87 = tpu.concatenate %45, %50, %57, %62, %38, %67, %74, %79, %86 in 0 : vector<8x64xf32>, vector<8x64xf32>, vector<8x64xf32>, vector<8x64xf32>, vector<8x64xf32>, vector<8x64xf32>, vector<8x64xf32>, vector<8x64xf32>, vector<8x64xf32> -> vector<72x64xf32>
    %cst_32 = arith.constant dense<0.000000e+00> : vector<8x64xf32>
    %88 = tpu.matmul %8, %87, %cst_32 {dimension_numbers = #tpu.dot_dimension_numbers<[1], [0], [0], [1], [0, 0, 1, 1], [], []>, precision = #tpu.contract_precision<fp32>} : vector<8x72xf32>, vector<72x64xf32>, vector<8x64xf32> -> vector<8x64xf32>
    %89 = vector.broadcast %9 : vector<8x1xf32> to vector<8x64xf32>
    %90 = arith.addf %88, %89 : vector<8x64xf32>
    %c0_33 = arith.constant 0 : index
    %c0_34 = arith.constant 0 : index
    %c0_35 = arith.constant 0 : index
    %91 = vector.load %arg9[%c0_33, %c0_34, %c0_35] : memref<1x8x64xf32, #tpu.memory_space<vmem>>, vector<1x8x64xf32>
    %92 = vector.shape_cast %91 : vector<1x8x64xf32> to vector<8x64xf32>
    %93 = vector.shape_cast %90 : vector<8x64xf32> to vector<1x8x64xf32>
    tpu.vector_store %arg9[%c0_33, %c0_34, %c0_35], %93 {strides = array<i32>} : memref<1x8x64xf32, #tpu.memory_space<vmem>>, vector<1x8x64xf32>,
    return
  }
  func.func @transform_0(%arg0: i32) -> (i32, i32, i32) {
    %c0_i32 = arith.constant 0 : i32
    %c0_i32_0 = arith.constant 0 : i32
    %c0_i32_1 = arith.constant 0 : i32
    return %arg0, %c0_i32, %c0_i32_0 : i32, i32, i32
  }
  func.func @transform_1(%arg0: i32) -> (i32, i32) {
    %c0_i32 = arith.constant 0 : i32
    %c0_i32_0 = arith.constant 0 : i32
    %c0_i32_1 = arith.constant 0 : i32
    return %c0_i32, %c0_i32_0 : i32, i32
  }
  func.func @transform_2(%arg0: i32) -> (i32, i32) {
    %c0_i32 = arith.constant 0 : i32
    %c0_i32_0 = arith.constant 0 : i32
    %c0_i32_1 = arith.constant 0 : i32
    return %c0_i32, %c0_i32_0 : i32, i32
  }
  func.func @transform_3(%arg0: i32) -> (i32, i32) {
    %c0_i32 = arith.constant 0 : i32
    %c0_i32_0 = arith.constant 0 : i32
    %c0_i32_1 = arith.constant 0 : i32
    return %c0_i32, %c0_i32_0 : i32, i32
  }
  func.func @transform_4(%arg0: i32) -> (i32, i32) {
    %c0_i32 = arith.constant 0 : i32
    %c0_i32_0 = arith.constant 0 : i32
    %c0_i32_1 = arith.constant 0 : i32
    return %c0_i32, %c0_i32_0 : i32, i32
  }
  func.func @transform_5(%arg0: i32) -> (i32, i32) {
    %c0_i32 = arith.constant 0 : i32
    %c0_i32_0 = arith.constant 0 : i32
    %c0_i32_1 = arith.constant 0 : i32
    return %c0_i32, %c0_i32_0 : i32, i32
  }
  func.func @transform_6(%arg0: i32) -> (i32, i32) {
    %c0_i32 = arith.constant 0 : i32
    %c0_i32_0 = arith.constant 0 : i32
    %c0_i32_1 = arith.constant 0 : i32
    return %c0_i32, %c0_i32_0 : i32, i32
  }
  func.func @transform_7(%arg0: i32) -> (i32, i32) {
    %c0_i32 = arith.constant 0 : i32
    %c0_i32_0 = arith.constant 0 : i32
    %c0_i32_1 = arith.constant 0 : i32
    return %c0_i32, %c0_i32_0 : i32, i32
  }
  func.func @transform_8(%arg0: i32) -> (i32, i32, i32) {
    %c0_i32 = arith.constant 0 : i32
    %c0_i32_0 = arith.constant 0 : i32
    %c0_i32_1 = arith.constant 0 : i32
    return %arg0, %c0_i32, %c0_i32_0 : i32, i32, i32
  }
}

</mosaic_0001>

<llo_original>
// kernel: tpu_custom_call.1
$region0: #{tpu_custom_call.1}
  #allocation0 [shape = 'u32[]', space=smem, size = 0x4, offset = 0x4, fixed_abs, tag = 'smem constant byte address 0x4 - core index']
  #allocation1 [shape = 'u32[72,128]{1,0:T(1,128)}', space=vmem, size = 0x9000, scoped, tag = 'internal scratch']
  %s0 = inlined_call_operand.hbm [shape: f32[2,16,64], index: 0, kind: input, shape index: {}]
  %s1 = inlined_call_operand.vmem [shape: f32[4,64], index: 1, kind: input, shape index: {}]
  %s2 = inlined_call_operand.vmem [shape: f32[16,1], index: 2, kind: input, shape index: {}]
  %s3 = inlined_call_operand.vmem [shape: f32[8,64], index: 3, kind: input, shape index: {}]
  %s4 = inlined_call_operand.vmem [shape: f32[8,1], index: 4, kind: input, shape index: {}]
  %s5 = inlined_call_operand.vmem [shape: f32[8,1], index: 5, kind: input, shape index: {}]
  %s6 = inlined_call_operand.vmem [shape: f32[8,72], index: 6, kind: input, shape index: {}]
  %s7 = inlined_call_operand.vmem [shape: f32[8,1], index: 7, kind: input, shape index: {}]
  %s8 = inlined_call_operand.hbm [shape: f32[2,8,64], index: 8, kind: output, shape index: {}]
  %s9 = sld [smem:[#allocation0]]
  $region69: #{tpu_custom_call.1} parent=0
    _
  %s11 = ssub.s32 1, %s9
  %s12 = scalar_select 0, %s11, %s9
  $region1: #{tpu_custom_call.1} parent=0
    #allocation2 [shape = 'u8[16384]{0}', space=vmem, size = 0x4000, scoped, tag = 'input window, operand 0']
    #allocation3 [shape = 's32[2]{0}', space=sflag, size = 0x8, scoped, tag = 'scoped memory for tpu_custom_call.1']
    #allocation4 [shape = 's32[2]{0}', space=sflag, size = 0x8, scoped, tag = 'scoped memory for tpu_custom_call.1']
    #allocation5 [shape = 'u8[8192]{0}', space=vmem, size = 0x2000, scoped, tag = 'output window, operand 0']
    %13 = vsyncpa [#allocation3], 0
    %s14 = scalar_lea.sflag [#allocation3], 1
    %15 = vsyncpa %s14, 0
    %16 = vsyncpa [#allocation4], 0
    %s17 = scalar_lea.sflag [#allocation4], 1
    %18 = vsyncpa %s17, 0
    loop: start=0, step=1, limit=4
    $region2: #{tpu_custom_call.1} parent=1 // loop_pre_header
      _
    $region3: #{tpu_custom_call.1} parent=1 // loop_header
      %s20 = sphi 0, %s24
      %p21 = scmp.ge.s32.totalorder %s20, 4
      %s30 = sphi 0, %s32
      %s33 = sphi 0, %s30
      %s34 = sphi 0, %s33
      %s50 = sphi 0, %s34
      %s54 = sphi 0, %s54
      %s56 = sphi 0, %s54
      %s57 = sphi 0, %s56
      %s71 = sphi 0, %s57
      %s75 = sphi 0, %s75
      %s77 = sphi 0, %s75
      %s78 = sphi 0, %s77
      %s92 = sphi 0, %s78
      %s96 = sphi 0, %s96
      %s98 = sphi 0, %s96
      %s99 = sphi 0, %s98
      %s113 = sphi 0, %s99
      %s117 = sphi 0, %s117
      %s119 = sphi 0, %s117
      %s120 = sphi 0, %s119
      %s134 = sphi 0, %s120
      %s138 = sphi 0, %s138
      %s140 = sphi 0, %s138
      %s141 = sphi 0, %s140
      %s155 = sphi 0, %s141
      %s159 = sphi 0, %s159
      %s161 = sphi 0, %s159
      %s162 = sphi 0, %s161
      %s176 = sphi 0, %s162
      %s180 = sphi 0, %s180
      %s182 = sphi 0, %s180
      %s183 = sphi 0, %s182
      %s197 = sphi 0, %s183
      %s203 = sphi 0, %s205
      %s206 = sphi 0, %s203
      %s207 = sphi 0, %s206
      %s223 = sphi 0, %s207
    $region4: #{tpu_custom_call.1} parent=1 // loop_header_branch
      %23 = sbr.rel (%p21) target = $region8
    $region5: #{tpu_custom_call.1} parent=1 // loop_body
      %s25 = ssub.s32 %s20, 1
      %s26 = ssub.s32 %s20, 2
      %s27 = sadd.s32 %s20, 1
      %s28 = ssub.s32 %s20, %s27
      %p29 = scmp.eq.s32.totalorder %s28, 0
      %s31 = sadd.s32 %s30, 1
      %s32 = scalar_select %p29, %s30, %s31
      %p35 = pneg %p29
      %p36 = scmp.eq.s32.totalorder %s20, 1
      %p37 = por %p35, %p36
      %p38 = scmp.ne.s32.totalorder %s30, %s33
      %p39 = scmp.eq.s32.totalorder %s20, 0
      %p40 = por %p38, %p39
      %p41 = scmp.ne.s32.totalorder %s30, %s33
      %p42 = scmp.eq.s32.totalorder %s25, 1
      %p43 = por %p41, %p42
      %p44 = scmp.ne.s32.totalorder %s33, %s34
      %p45 = scmp.eq.s32.totalorder %s25, 0
      %p46 = por %p44, %p45
      %p47 = scmp.ne.s32.totalorder %s33, %s34
      %p48 = scmp.eq.s32.totalorder %s26, 1
      %p49 = por %p47, %p48
      %p51 = scmp.ne.s32.totalorder %s34, %s50
      %p52 = scmp.eq.s32.totalorder %s26, 0
      %p53 = por %p51, %p52
      %s55 = sadd.s32 %s54, 1
      %p58 = scmp.eq.s32.totalorder %s20, 1
      %p59 = scmp.ne.s32.totalorder %s54, %s56
      %p60 = scmp.eq.s32.totalorder %s20, 0
      %p61 = por %p59, %p60
      %p62 = scmp.ne.s32.totalorder %s54, %s56
      %p63 = scmp.eq.s32.totalorder %s25, 1
      %p64 = por %p62, %p63
      %p65 = scmp.ne.s32.totalorder %s56, %s57
      %p66 = scmp.eq.s32.totalorder %s25, 0
      %p67 = por %p65, %p66
      %p68 = scmp.ne.s32.totalorder %s56, %s57
      %p69 = scmp.eq.s32.totalorder %s26, 1
      %p70 = por %p68, %p69
      %p72 = scmp.ne.s32.totalorder %s57, %s71
      %p73 = scmp.eq.s32.totalorder %s26, 0
      %p74 = por %p72, %p73
      %s76 = sadd.s32 %s75, 1
      %p79 = scmp.eq.s32.totalorder %s20, 1
      %p80 = scmp.ne.s32.totalorder %s75, %s77
      %p81 = scmp.eq.s32.totalorder %s20, 0
      %p82 = por %p80, %p81
      %p83 = scmp.ne.s32.totalorder %s75, %s77
      %p84 = scmp.eq.s32.totalorder %s25, 1
      %p85 = por %p83, %p84
      %p86 = scmp.ne.s32.totalorder %s77, %s78
      %p87 = scmp.eq.s32.totalorder %s25, 0
      %p88 = por %p86, %p87
      %p89 = scmp.ne.s32.totalorder %s77, %s78
      %p90 = scmp.eq.s32.totalorder %s26, 1
      %p91 = por %p89, %p90
      %p93 = scmp.ne.s32.totalorder %s78, %s92
      %p94 = scmp.eq.s32.totalorder %s26, 0
      %p95 = por %p93, %p94
      %s97 = sadd.s32 %s96, 1
      %p100 = scmp.eq.s32.totalorder %s20, 1
      %p101 = scmp.ne.s32.totalorder %s96, %s98
      %p102 = scmp.eq.s32.totalorder %s20, 0
      %p103 = por %p101, %p102
      %p104 = scmp.ne.s32.totalorder %s96, %s98
      %p105 = scmp.eq.s32.totalorder %s25, 1
      %p106 = por %p104, %p105
      %p107 = scmp.ne.s32.totalorder %s98, %s99
      %p108 = scmp.eq.s32.totalorder %s25, 0
      %p109 = por %p107, %p108
      %p110 = scmp.ne.s32.totalorder %s98, %s99
      %p111 = scmp.eq.s32.totalorder %s26, 1
      %p112 = por %p110, %p111
      %p114 = scmp.ne.s32.totalorder %s99, %s113
      %p115 = scmp.eq.s32.totalorder %s26, 0
      %p116 = por %p114, %p115
      %s118 = sadd.s32 %s117, 1
      %p121 = scmp.eq.s32.totalorder %s20, 1
      %p122 = scmp.ne.s32.totalorder %s117, %s119
      %p123 = scmp.eq.s32.totalorder %s20, 0
      %p124 = por %p122, %p123
      %p125 = scmp.ne.s32.totalorder %s117, %s119
      %p126 = scmp.eq.s32.totalorder %s25, 1
      %p127 = por %p125, %p126
      %p128 = scmp.ne.s32.totalorder %s119, %s120
      %p129 = scmp.eq.s32.totalorder %s25, 0
      %p130 = por %p128, %p129
      %p131 = scmp.ne.s32.totalorder %s119, %s120
      %p132 = scmp.eq.s32.totalorder %s26, 1
      %p133 = por %p131, %p132
      %p135 = scmp.ne.s32.totalorder %s120, %s134
      %p136 = scmp.eq.s32.totalorder %s26, 0
      %p137 = por %p135, %p136
      %s139 = sadd.s32 %s138, 1
      %p142 = scmp.eq.s32.totalorder %s20, 1
      %p143 = scmp.ne.s32.totalorder %s138, %s140
      %p144 = scmp.eq.s32.totalorder %s20, 0
      %p145 = por %p143, %p144
      %p146 = scmp.ne.s32.totalorder %s138, %s140
      %p147 = scmp.eq.s32.totalorder %s25, 1
      %p148 = por %p146, %p147
      %p149 = scmp.ne.s32.totalorder %s140, %s141
      %p150 = scmp.eq.s32.totalorder %s25, 0
      %p151 = por %p149, %p150
      %p152 = scmp.ne.s32.totalorder %s140, %s141
      %p153 = scmp.eq.s32.totalorder %s26, 1
      %p154 = por %p152, %p153
      %p156 = scmp.ne.s32.totalorder %s141, %s155
      %p157 = scmp.eq.s32.totalorder %s26, 0
      %p158 = por %p156, %p157
      %s160 = sadd.s32 %s159, 1
      %p163 = scmp.eq.s32.totalorder %s20, 1
      %p164 = scmp.ne.s32.totalorder %s159, %s161
      %p165 = scmp.eq.s32.totalorder %s20, 0
      %p166 = por %p164, %p165
      %p167 = scmp.ne.s32.totalorder %s159, %s161
      %p168 = scmp.eq.s32.totalorder %s25, 1
      %p169 = por %p167, %p168
      %p170 = scmp.ne.s32.totalorder %s161, %s162
      %p171 = scmp.eq.s32.totalorder %s25, 0
      %p172 = por %p170, %p171
      %p173 = scmp.ne.s32.totalorder %s161, %s162
      %p174 = scmp.eq.s32.totalorder %s26, 1
      %p175 = por %p173, %p174
      %p177 = scmp.ne.s32.totalorder %s162, %s176
      %p178 = scmp.eq.s32.totalorder %s26, 0
      %p179 = por %p177, %p178
      %s181 = sadd.s32 %s180, 1
      %p184 = scmp.eq.s32.totalorder %s20, 1
      %p185 = scmp.ne.s32.totalorder %s180, %s182
      %p186 = scmp.eq.s32.totalorder %s20, 0
      %p187 = por %p185, %p186
      %p188 = scmp.ne.s32.totalorder %s180, %s182
      %p189 = scmp.eq.s32.totalorder %s25, 1
      %p190 = por %p188, %p189
      %p191 = scmp.ne.s32.totalorder %s182, %s183
      %p192 = scmp.eq.s32.totalorder %s25, 0
      %p193 = por %p191, %p192
      %p194 = scmp.ne.s32.totalorder %s182, %s183
      %p195 = scmp.eq.s32.totalorder %s26, 1
      %p196 = por %p194, %p195
      %p198 = scmp.ne.s32.totalorder %s183, %s197
      %p199 = scmp.eq.s32.totalorder %s26, 0
      %p200 = por %p198, %p199
      %s201 = ssub.s32 %s20, %s27
      %p202 = scmp.eq.s32.totalorder %s201, 0
      %s204 = sadd.s32 %s203, 1
      %s205 = scalar_select %p202, %s203, %s204
      %p208 = pneg %p202
      %p209 = scmp.eq.s32.totalorder %s20, 1
      %p210 = por %p208, %p209
      %p211 = scmp.ne.s32.totalorder %s203, %s206
      %p212 = scmp.eq.s32.totalorder %s20, 0
      %p213 = por %p211, %p212
      %p214 = scmp.ne.s32.totalorder %s203, %s206
      %p215 = scmp.eq.s32.totalorder %s25, 1
      %p216 = por %p214, %p215
      %p217 = scmp.ne.s32.totalorder %s206, %s207
      %p218 = scmp.eq.s32.totalorder %s25, 0
      %p219 = por %p217, %p218
      %p220 = scmp.ne.s32.totalorder %s206, %s207
      %p221 = scmp.eq.s32.totalorder %s26, 1
      %p222 = por %p220, %p221
      %p224 = scmp.ne.s32.totalorder %s207, %s223
      %p225 = scmp.eq.s32.totalorder %s26, 0
      %p226 = por %p224, %p225
      %p227 = scmp.le.s32.totalorder 1, %s20
      %p228 = scmp.lt.s32.totalorder %s20, 3
      %p229 = pnand %p227, %p228
      %p230 = pneg %p229
      // Predicated region
      $region9: #{tpu_custom_call.1} parent=5 // pred_check
        _
      $region10: #{tpu_custom_call.1} parent=5 // pred_check_branch
        %232 = sbr.rel (%p229) target = $region12
      $region11: #{tpu_custom_call.1} parent=5 // pred_region
        %s233 = ssub.s32 %s20, 1
        // Predicated region
        $region13: #{tpu_custom_call.1} parent=11 // pred_check
          %p234 = pneg %p67
        $region14: #{tpu_custom_call.1} parent=11 // pred_check_branch
          %236 = sbr.rel (%p234) target = $region16
        $region15: #{tpu_custom_call.1} parent=11 // pred_region
          _
        $region16: #{tpu_custom_call.1} parent=11 // pred_fallthru
          _
        // Predicated region
        $region17: #{tpu_custom_call.1} parent=11 // pred_check
          %p237 = pneg %p88
        $region18: #{tpu_custom_call.1} parent=11 // pred_check_branch
          %239 = sbr.rel (%p237) target = $region20
        $region19: #{tpu_custom_call.1} parent=11 // pred_region
          _
        $region20: #{tpu_custom_call.1} parent=11 // pred_fallthru
          _
        // Predicated region
        $region21: #{tpu_custom_call.1} parent=11 // pred_check
          %p240 = pneg %p109
        $region22: #{tpu_custom_call.1} parent=11 // pred_check_branch
          %242 = sbr.rel (%p240) target = $region24
        $region23: #{tpu_custom_call.1} parent=11 // pred_region
          _
        $region24: #{tpu_custom_call.1} parent=11 // pred_fallthru
          _
        // Predicated region
        $region25: #{tpu_custom_call.1} parent=11 // pred_check
          %p243 = pneg %p130
        $region26: #{tpu_custom_call.1} parent=11 // pred_check_branch
          %245 = sbr.rel (%p243) target = $region28
        $region27: #{tpu_custom_call.1} parent=11 // pred_region
          _
        $region28: #{tpu_custom_call.1} parent=11 // pred_fallthru
          _
        // Predicated region
        $region29: #{tpu_custom_call.1} parent=11 // pred_check
          %p246 = pneg %p151
        $region30: #{tpu_custom_call.1} parent=11 // pred_check_branch
          %248 = sbr.rel (%p246) target = $region32
        $region31: #{tpu_custom_call.1} parent=11 // pred_region
          _
        $region32: #{tpu_custom_call.1} parent=11 // pred_fallthru
          _
        // Predicated region
        $region33: #{tpu_custom_call.1} parent=11 // pred_check
          %p249 = pneg %p172
        $region34: #{tpu_custom_call.1} parent=11 // pred_check_branch
          %251 = sbr.rel (%p249) target = $region36
        $region35: #{tpu_custom_call.1} parent=11 // pred_region
          _
        $region36: #{tpu_custom_call.1} parent=11 // pred_fallthru
          _
        // Predicated region
        $region37: #{tpu_custom_call.1} parent=11 // pred_check
          %p252 = pneg %p193
        $region38: #{tpu_custom_call.1} parent=11 // pred_check_branch
          %254 = sbr.rel (%p252) target = $region40
        $region39: #{tpu_custom_call.1} parent=11 // pred_region
          _
        $region40: #{tpu_custom_call.1} parent=11 // pred_fallthru
          _
      $region12: #{tpu_custom_call.1} parent=5 // pred_fallthru
        _
      %p255 = scmp.lt.s32.totalorder %s20, 2
      // Predicated region
      $region41: #{tpu_custom_call.1} parent=5 // pred_check
        %p256 = pneg %p255
      $region42: #{tpu_custom_call.1} parent=5 // pred_check_branch
        %258 = sbr.rel (%p256) target = $region44
      $region43: #{tpu_custom_call.1} parent=5 // pred_region
        // Predicated region
        $region45: #{tpu_custom_call.1} parent=43 // pred_check
          %p259 = pneg %p40
        $region46: #{tpu_custom_call.1} parent=43 // pred_check_branch
          %261 = sbr.rel (%p259) target = $region48
        $region47: #{tpu_custom_call.1} parent=43 // pred_region
          %s262 = sand.u32 %s30, 1
          %s263 = scalar_lea.sflag [#allocation3], %s262
          %s264 = sand.u32 %s30, 1
          %s265 = smul.addr %s264, 16
          %s266 = scalar_lea.vmem [#allocation2], %s265
          %268 = vsyncadd %s263, 0
          %s269 = smul.addr %s20, 2
          %s270 = smul.addr %s269, 8
          %s271 = scalar_lea.hbm %s0, %s270
          %s272 = sshll.u32 %s271, 4
          %s273 = int_to_ptr.hbm [resolvable:$true] %s272
          %s274 = sshll.u32 %s266, 4
          %s275 = int_to_ptr.vmem [resolvable:$true] %s274
          %280 = dma.hbm_to_vmem [thread:$0]  %s273, 256, %s275, %s263, 128, 128, 8
        $region48: #{tpu_custom_call.1} parent=43 // pred_fallthru
          _
      $region44: #{tpu_custom_call.1} parent=5 // pred_fallthru
        _
      %p281 = scmp.le.s32.totalorder 1, %s20
      %p282 = scmp.lt.s32.totalorder %s20, 3
      %p283 = pnand %p281, %p282
      %p284 = pneg %p283
      // Predicated region
      $region49: #{tpu_custom_call.1} parent=5 // pred_check
        _
      $region50: #{tpu_custom_call.1} parent=5 // pred_check_branch
        %286 = sbr.rel (%p283) target = $region52
      $region51: #{tpu_custom_call.1} parent=5 // pred_region
        %s287 = ssub.s32 %s20, 1
        %s288 = sand.u32 %s33, 1
        %s289 = scalar_lea.sflag [#allocation3], %s288
        %s290 = sand.u32 %s33, 1
        %s291 = smul.addr %s290, 16
        %s292 = scalar_lea.vmem [#allocation2], %s291
        // Predicated region
        $region53: #{tpu_custom_call.1} parent=51 // pred_check
          %p293 = pneg %p46
        $region54: #{tpu_custom_call.1} parent=51 // pred_check_branch
          %295 = sbr.rel (%p293) target = $region56
        $region55: #{tpu_custom_call.1} parent=51 // pred_region
          %297 = dma.done %s289, 256
        $region56: #{tpu_custom_call.1} parent=51 // pred_fallthru
          _
        %s298 = sand.u32 %s33, 1
        %s299 = scalar_lea.sflag [#allocation3], %s298
        %s300 = sand.u32 %s33, 1
        %s301 = smul.addr %s300, 16
        %s302 = scalar_lea.vmem [#allocation2], %s301
        %p303 = pneg %p46
        %p304 = pneg %p43
        %p305 = pneg %p67
        %p306 = pneg %p64
        %p307 = pneg %p88
        %p308 = pneg %p85
        %p309 = pneg %p109
        %p310 = pneg %p106
        %p311 = pneg %p130
        %p312 = pneg %p127
        %p313 = pneg %p151
        %p314 = pneg %p148
        %p315 = pneg %p172
        %p316 = pneg %p169
        %p317 = pneg %p193
        %p318 = pneg %p190
        %p319 = pneg %p219
        %p320 = pneg %p216
        %s321 = sand.u32 %s206, 1
        %s322 = scalar_lea.sflag [#allocation4], %s321
        %s323 = sand.u32 %s206, 1
        %s324 = smul.addr %s323, 8
        %s325 = scalar_lea.vmem [#allocation5], %s324
        %v326 = vld [vmem:[%s1] sm:$0x1]
        %v327 = vld [vmem:[%s1 + $0x1] sm:$0x1]
        %v328 = vld [vmem:[%s1 + $0x2] sm:$0x1]
        %v329 = vld [vmem:[%s1 + $0x3] sm:$0x1]
        %v330 = vld [vmem:[%s2] sm:$0xff]
        %v331 = vld [vmem:[%s2 + $0x8] sm:$0xff]
        %v332 = vld [vmem:[%s3] sm:$0xff]
        %v333 = vld [vmem:[%s4] sm:$0xff]
        %v334 = vld [vmem:[%s5] sm:$0xff]
        %v335 = vld [vmem:[%s6] sm:$0xff]
        %v336 = vld [vmem:[%s7] sm:$0xff]
        %v337 = vld [vmem:[%s292] sm:$0xff]
        %v338 = vld [vmem:[%s292 + $0x8] sm:$0xff]
        %vm339 = vcmp.ge.f32.partialorder %v337, 0.0
        %vm340 = vcmp.ge.f32.partialorder %v338, 0.0
        %342 = vset.pattern.permute.xlu0 0
        %343 = vperm.xlu0 %342, %v330
        %v344 = vpop.permute.xlu0 %343
        %347 = vset.pattern.permute.xlu0 0
        %348 = vperm.xlu0 %347, %v331
        %v349 = vpop.permute.xlu0 %348
        %v351 = vmul.f32 %v344, %v337
        %v352 = vmul.f32 %v349, %v338
        %v353 = vsel %vm339, %v337, %v351
        %v354 = vsel %vm340, %v338, %v352
        %357 = vrot.lane.b32.xlu0 %v353, 9
        %v358 = vpop.permute.xlu0 %357
        %359 = vrot.lane.b32.xlu0 %v354, 9
        %v360 = vpop.permute.xlu0 %359
        %vm363 = vcmask 72704
        %v364 = vsel %vm363, 0.0, %v358
        %v365 = vsel %vm363, 0.0, %v360
        %v366 = vperm.slane %v326, 0
        %v367 = vmul.f32 %v364, %v366
        %v368 = vmul.f32 %v365, %v366
        %369 = vrot.lane.b32.xlu0 %v353, 8
        %v370 = vpop.permute.xlu0 %369
        %371 = vrot.lane.b32.xlu0 %v354, 8
        %v372 = vpop.permute.xlu0 %371
        %vm375 = vcmask 64512
        %v376 = vsel %vm375, 0.0, %v370
        %v377 = vsel %vm375, 0.0, %v372
        %378 = vrot.lane.b32.xlu0 %v353, 1
        %v379 = vpop.permute.xlu0 %378
        %380 = vrot.lane.b32.xlu0 %v354, 1
        %v381 = vpop.permute.xlu0 %380
        %vm384 = vcmask 7168
        %v385 = vsel %vm384, 0.0, %v379
        %v386 = vsel %vm384, 0.0, %v381
        %v387 = vmul.f32 %v385, %v366
        %v388 = vmul.f32 %v386, %v366
        %390 = vset.pattern.permute.xlu0 0
        %391 = vperm.xlu0 %390, %v333
        %v392 = vpop.permute.xlu0 %391
        %vm394 = vcmask 523264
        %v396 = vsel %vm394, %v332, 0
        %398 = vmatpush.msra.mxu0 0.0
        %399 = vmatpush.msra.mxu0 0.0
        %400 = vmatpush.msra.mxu0 0.0
        %401 = vmatpush.msra.mxu0 0.0
        %402 = vmatpush.msra.mxu0 0.0
        %403 = vmatpush.msra.mxu0 0.0
        %404 = vmatpush.msra.mxu0 0.0
        %405 = vmatpush.msra.mxu0 0.0
        %v406 = vand.u32 %v354, 4294901760
        %407 = vmatpush.msra.mxu0 %v406
        %v408 = vand.u32 %v353, 4294901760
        %409 = vmatpush.msra.mxu0 %v408
        %v410 = vand.u32 %v388, 4294901760
        %411 = vmatpush.msra.mxu0 %v410
        %v412 = vand.u32 %v387, 4294901760
        %413 = vmatpush.msra.mxu0 %v412
        %v414 = vand.u32 %v377, 4294901760
        %415 = vmatpush.msra.mxu0 %v414
        %v416 = vand.u32 %v376, 4294901760
        %417 = vmatpush.msra.mxu0 %v416
        %v418 = vand.u32 %v368, 4294901760
        %419 = vmatpush.msra.mxu0 %v418
        %v420 = vand.u32 %v367, 4294901760
        %421 = vmatpush.msra.mxu0 %v420
        %v422 = vand.u32 %v396, 4294901760
        %v423 = vsub.f32 %v396, %v422
        %v424 = vand.u32 %v423, 4294901760
        %v425 = vsub.f32 %v423, %v424
        %v426 = vand.u32 %v425, 4294901760
        %427 = vmatmul.f32.gmra.mxu0 %v426
        %v428 = vpop.f32.mrf.mxu0
        %v429 = vadd.f32 %v392, %v428
        %430 = vdwg.mxu0
        %431 = vmatpush.msra.mxu0 0.0
        %432 = vmatpush.msra.mxu0 0.0
        %433 = vmatpush.msra.mxu0 0.0
        %434 = vmatpush.msra.mxu0 0.0
        %435 = vmatpush.msra.mxu0 0.0
        %436 = vmatpush.msra.mxu0 0.0
        %437 = vmatpush.msra.mxu0 0.0
        %438 = vmatpush.msra.mxu0 0.0
        %v439 = vand.u32 %v354, 4294901760
        %v440 = vsub.f32 %v354, %v439
        %v441 = vand.u32 %v440, 4294901760
        %v442 = vsub.f32 %v440, %v441
        %v443 = vand.u32 %v442, 4294901760
        %444 = vmatpush.msra.mxu0 %v443
        %v445 = vand.u32 %v353, 4294901760
        %v446 = vsub.f32 %v353, %v445
        %v447 = vand.u32 %v446, 4294901760
        %v448 = vsub.f32 %v446, %v447
        %v449 = vand.u32 %v448, 4294901760
        %450 = vmatpush.msra.mxu0 %v449
        %v451 = vand.u32 %v388, 4294901760
        %v452 = vsub.f32 %v388, %v451
        %v453 = vand.u32 %v452, 4294901760
        %v454 = vsub.f32 %v452, %v453
        %v455 = vand.u32 %v454, 4294901760
        %456 = vmatpush.msra.mxu0 %v455
        %v457 = vand.u32 %v387, 4294901760
        %v458 = vsub.f32 %v387, %v457
        %v459 = vand.u32 %v458, 4294901760
        %v460 = vsub.f32 %v458, %v459
        %v461 = vand.u32 %v460, 4294901760
        %462 = vmatpush.msra.mxu0 %v461
        %v463 = vand.u32 %v377, 4294901760
        %v464 = vsub.f32 %v377, %v463
        %v465 = vand.u32 %v464, 4294901760
        %v466 = vsub.f32 %v464, %v465
        %v467 = vand.u32 %v466, 4294901760
        %468 = vmatpush.msra.mxu0 %v467
        %v469 = vand.u32 %v376, 4294901760
        %v470 = vsub.f32 %v376, %v469
        %v471 = vand.u32 %v470, 4294901760
        %v472 = vsub.f32 %v470, %v471
        %v473 = vand.u32 %v472, 4294901760
        %474 = vmatpush.msra.mxu0 %v473
        %v475 = vand.u32 %v368, 4294901760
        %v476 = vsub.f32 %v368, %v475
        %v477 = vand.u32 %v476, 4294901760
        %v478 = vsub.f32 %v476, %v477
        %v479 = vand.u32 %v478, 4294901760
        %480 = vmatpush.msra.mxu0 %v479
        %v481 = vand.u32 %v367, 4294901760
        %v482 = vsub.f32 %v367, %v481
        %v483 = vand.u32 %v482, 4294901760
        %v484 = vsub.f32 %v482, %v483
        %v485 = vand.u32 %v484, 4294901760
        %486 = vmatpush.msra.mxu0 %v485
        %v487 = vand.u32 %v396, 4294901760
        %488 = vmatmul.f32.gmra.mxu0 %v487
        %v489 = vpop.f32.mrf.mxu0
        %v490 = vadd.f32 %v429, %v489
        %491 = vdwg.mxu0
        %492 = vmatpush.msra.mxu0 0.0
        %493 = vmatpush.msra.mxu0 0.0
        %494 = vmatpush.msra.mxu0 0.0
        %495 = vmatpush.msra.mxu0 0.0
        %496 = vmatpush.msra.mxu0 0.0
        %497 = vmatpush.msra.mxu0 0.0
        %498 = vmatpush.msra.mxu0 0.0
        %499 = vmatpush.msra.mxu0 0.0
        %v500 = vand.u32 %v354, 4294901760
        %v501 = vsub.f32 %v354, %v500
        %502 = vmatpush.msra.mxu0 %v501
        %v503 = vand.u32 %v353, 4294901760
        %v504 = vsub.f32 %v353, %v503
        %505 = vmatpush.msra.mxu0 %v504
        %v506 = vand.u32 %v388, 4294901760
        %v507 = vsub.f32 %v388, %v506
        %508 = vmatpush.msra.mxu0 %v507
        %v509 = vand.u32 %v387, 4294901760
        %v510 = vsub.f32 %v387, %v509
        %511 = vmatpush.msra.mxu0 %v510
        %v512 = vand.u32 %v377, 4294901760
        %v513 = vsub.f32 %v377, %v512
        %514 = vmatpush.msra.mxu0 %v513
        %v515 = vand.u32 %v376, 4294901760
        %v516 = vsub.f32 %v376, %v515
        %517 = vmatpush.msra.mxu0 %v516
        %v518 = vand.u32 %v368, 4294901760
        %v519 = vsub.f32 %v368, %v518
        %520 = vmatpush.msra.mxu0 %v519
        %v521 = vand.u32 %v367, 4294901760
        %v522 = vsub.f32 %v367, %v521
        %523 = vmatpush.msra.mxu0 %v522
        %v524 = vand.u32 %v396, 4294901760
        %v525 = vsub.f32 %v396, %v524
        %526 = vmatmul.f32.gmra.mxu0 %v525
        %v527 = vpop.f32.mrf.mxu0
        %v528 = vadd.f32 %v490, %v527
        %529 = vdwg.mxu0
        %530 = vmatpush.msra.mxu0 0.0
        %531 = vmatpush.msra.mxu0 0.0
        %532 = vmatpush.msra.mxu0 0.0
        %533 = vmatpush.msra.mxu0 0.0
        %534 = vmatpush.msra.mxu0 0.0
        %535 = vmatpush.msra.mxu0 0.0
        %536 = vmatpush.msra.mxu0 0.0
        %537 = vmatpush.msra.mxu0 0.0
        %v538 = vand.u32 %v354, 4294901760
        %539 = vmatpush.msra.mxu0 %v538
        %v540 = vand.u32 %v353, 4294901760
        %541 = vmatpush.msra.mxu0 %v540
        %v542 = vand.u32 %v388, 4294901760
        %543 = vmatpush.msra.mxu0 %v542
        %v544 = vand.u32 %v387, 4294901760
        %545 = vmatpush.msra.mxu0 %v544
        %v546 = vand.u32 %v377, 4294901760
        %547 = vmatpush.msra.mxu0 %v546
        %v548 = vand.u32 %v376, 4294901760
        %549 = vmatpush.msra.mxu0 %v548
        %v550 = vand.u32 %v368, 4294901760
        %551 = vmatpush.msra.mxu0 %v550
        %v552 = vand.u32 %v367, 4294901760
        %553 = vmatpush.msra.mxu0 %v552
        %v554 = vand.u32 %v396, 4294901760
        %v555 = vsub.f32 %v396, %v554
        %v556 = vand.u32 %v555, 4294901760
        %557 = vmatmul.f32.gmra.mxu0 %v556
        %v558 = vpop.f32.mrf.mxu0
        %v559 = vadd.f32 %v528, %v558
        %560 = vdwg.mxu0
        %561 = vmatpush.msra.mxu0 0.0
        %562 = vmatpush.msra.mxu0 0.0
        %563 = vmatpush.msra.mxu0 0.0
        %564 = vmatpush.msra.mxu0 0.0
        %565 = vmatpush.msra.mxu0 0.0
        %566 = vmatpush.msra.mxu0 0.0
        %567 = vmatpush.msra.mxu0 0.0
        %568 = vmatpush.msra.mxu0 0.0
        %v569 = vand.u32 %v354, 4294901760
        %v570 = vsub.f32 %v354, %v569
        %v571 = vand.u32 %v570, 4294901760
        %572 = vmatpush.msra.mxu0 %v571
        %v573 = vand.u32 %v353, 4294901760
        %v574 = vsub.f32 %v353, %v573
        %v575 = vand.u32 %v574, 4294901760
        %576 = vmatpush.msra.mxu0 %v575
        %v577 = vand.u32 %v388, 4294901760
        %v578 = vsub.f32 %v388, %v577
        %v579 = vand.u32 %v578, 4294901760
        %580 = vmatpush.msra.mxu0 %v579
        %v581 = vand.u32 %v387, 4294901760
        %v582 = vsub.f32 %v387, %v581
        %v583 = vand.u32 %v582, 4294901760
        %584 = vmatpush.msra.mxu0 %v583
        %v585 = vand.u32 %v377, 4294901760
        %v586 = vsub.f32 %v377, %v585
        %v587 = vand.u32 %v586, 4294901760
        %588 = vmatpush.msra.mxu0 %v587
        %v589 = vand.u32 %v376, 4294901760
        %v590 = vsub.f32 %v376, %v589
        %v591 = vand.u32 %v590, 4294901760
        %592 = vmatpush.msra.mxu0 %v591
        %v593 = vand.u32 %v368, 4294901760
        %v594 = vsub.f32 %v368, %v593
        %v595 = vand.u32 %v594, 4294901760
        %596 = vmatpush.msra.mxu0 %v595
        %v597 = vand.u32 %v367, 4294901760
        %v598 = vsub.f32 %v367, %v597
        %v599 = vand.u32 %v598, 4294901760
        %600 = vmatpush.msra.mxu0 %v599
        %v601 = vand.u32 %v396, 4294901760
        %602 = vmatmul.f32.gmra.mxu0 %v601
        %v603 = vpop.f32.mrf.mxu0
        %v604 = vadd.f32 %v559, %v603
        %605 = vdwg.mxu0
        %606 = vmatpush.msra.mxu0 0.0
        %607 = vmatpush.msra.mxu0 0.0
        %608 = vmatpush.msra.mxu0 0.0
        %609 = vmatpush.msra.mxu0 0.0
        %610 = vmatpush.msra.mxu0 0.0
        %611 = vmatpush.msra.mxu0 0.0
        %612 = vmatpush.msra.mxu0 0.0
        %613 = vmatpush.msra.mxu0 0.0
        %v614 = vand.u32 %v354, 4294901760
        %615 = vmatpush.msra.mxu0 %v614
        %v616 = vand.u32 %v353, 4294901760
        %617 = vmatpush.msra.mxu0 %v616
        %v618 = vand.u32 %v388, 4294901760
        %619 = vmatpush.msra.mxu0 %v618
        %v620 = vand.u32 %v387, 4294901760
        %621 = vmatpush.msra.mxu0 %v620
        %v622 = vand.u32 %v377, 4294901760
        %623 = vmatpush.msra.mxu0 %v622
        %v624 = vand.u32 %v376, 4294901760
        %625 = vmatpush.msra.mxu0 %v624
        %v626 = vand.u32 %v368, 4294901760
        %627 = vmatpush.msra.mxu0 %v626
        %v628 = vand.u32 %v367, 4294901760
        %629 = vmatpush.msra.mxu0 %v628
        %v630 = vand.u32 %v396, 4294901760
        %631 = vmatmul.f32.gmra.mxu0 %v630
        %v632 = vpop.f32.mrf.mxu0
        %v633 = vadd.f32 %v604, %v632
        %634 = vdwg.mxu0
        %vm635 = vcmp.ge.f32.partialorder %v633, 0.0
        %637 = vset.pattern.permute.xlu0 0
        %638 = vperm.xlu0 %637, %v334
        %v639 = vpop.permute.xlu0 %638
        %v641 = vmul.f32 %v639, %v633
        %v642 = vsel %vm635, %v633, %v641
        %644 = vrot.lane.b32.xlu0 %v642, 9
        %v645 = vpop.permute.xlu0 %644
        %v647 = vsel %vm363, 0.0, %v645
        %v648 = vperm.slane %v328, 0
        %v649 = vmul.f32 %v647, %v648
        %v650 = vmul.f32 %v649, %v366
        %651 = vrot.lane.b32.xlu0 %v642, 8
        %v652 = vpop.permute.xlu0 %651
        %v654 = vsel %vm375, 0.0, %v652
        %v655 = vmul.f32 %v654, %v648
        %656 = vrot.lane.b32.xlu0 %v642, 7
        %v657 = vpop.permute.xlu0 %656
        %vm659 = vcmask 56320
        %v660 = vsel %vm659, 0.0, %v657
        %v661 = vmul.f32 %v660, %v648
        %v662 = vperm.slane %v327, 0
        %v663 = vmul.f32 %v661, %v662
        %664 = vrot.lane.b32.xlu0 %v642, 1
        %v665 = vpop.permute.xlu0 %664
        %v667 = vsel %vm384, 0.0, %v665
        %v668 = vmul.f32 %v667, %v366
        %669 = vrot.lane.b32.xlu0 %v642, 127
        %v670 = vpop.permute.xlu0 %669
        %vm672 = vcmask 515072
        %v673 = vsel %vm672, %v670, 0.0
        %v674 = vmul.f32 %v673, %v662
        %675 = vrot.lane.b32.xlu0 %v642, 121
        %v676 = vpop.permute.xlu0 %675
        %vm678 = vcmask 465920
        %v679 = vsel %vm678, %v676, 0.0
        %v680 = vperm.slane %v329, 0
        %v681 = vmul.f32 %v679, %v680
        %v682 = vmul.f32 %v681, %v366
        %683 = vrot.lane.b32.xlu0 %v642, 120
        %v684 = vpop.permute.xlu0 %683
        %vm686 = vcmask 457728
        %v687 = vsel %vm686, %v684, 0.0
        %v688 = vmul.f32 %v687, %v680
        %689 = vrot.lane.b32.xlu0 %v642, 119
        %v690 = vpop.permute.xlu0 %689
        %vm692 = vcmask 449536
        %v693 = vsel %vm692, %v690, 0.0
        %v694 = vmul.f32 %v693, %v680
        %v695 = vmul.f32 %v694, %v662
        %697 = vset.pattern.permute.xlu0 0
        %698 = vperm.xlu0 %697, %v336
        %v699 = vpop.permute.xlu0 %698
        %vm701 = vcmask 588800
        %v703 = vsel %vm701, %v335, 0
        %705 = vmatpush.msra.mxu0 0.0
        %706 = vmatpush.msra.mxu0 0.0
        %707 = vmatpush.msra.mxu0 0.0
        %708 = vmatpush.msra.mxu0 0.0
        %709 = vmatpush.msra.mxu0 0.0
        %710 = vmatpush.msra.mxu0 0.0
        %711 = vmatpush.msra.mxu0 0.0
        %v712 = vand.u32 %v695, 4294901760
        %713 = vmatpush.msra.mxu0 %v712
        %v714 = vand.u32 %v688, 4294901760
        %715 = vmatpush.msra.mxu0 %v714
        %v716 = vand.u32 %v682, 4294901760
        %717 = vmatpush.msra.mxu0 %v716
        %v718 = vand.u32 %v674, 4294901760
        %719 = vmatpush.msra.mxu0 %v718
        %v720 = vand.u32 %v642, 4294901760
        %721 = vmatpush.msra.mxu0 %v720
        %v722 = vand.u32 %v668, 4294901760
        %723 = vmatpush.msra.mxu0 %v722
        %v724 = vand.u32 %v663, 4294901760
        %725 = vmatpush.msra.mxu0 %v724
        %v726 = vand.u32 %v655, 4294901760
        %727 = vmatpush.msra.mxu0 %v726
        %v728 = vand.u32 %v650, 4294901760
        %729 = vmatpush.msra.mxu0 %v728
        %v730 = vand.u32 %v703, 4294901760
        %v731 = vsub.f32 %v703, %v730
        %v732 = vand.u32 %v731, 4294901760
        %v733 = vsub.f32 %v731, %v732
        %v734 = vand.u32 %v733, 4294901760
        %735 = vmatmul.f32.gmra.mxu0 %v734
        %v736 = vpop.f32.mrf.mxu0
        %v737 = vadd.f32 %v699, %v736
        %738 = vdwg.mxu0
        %739 = vmatpush.msra.mxu0 0.0
        %740 = vmatpush.msra.mxu0 0.0
        %741 = vmatpush.msra.mxu0 0.0
        %742 = vmatpush.msra.mxu0 0.0
        %743 = vmatpush.msra.mxu0 0.0
        %744 = vmatpush.msra.mxu0 0.0
        %745 = vmatpush.msra.mxu0 0.0
        %v746 = vand.u32 %v695, 4294901760
        %v747 = vsub.f32 %v695, %v746
        %v748 = vand.u32 %v747, 4294901760
        %v749 = vsub.f32 %v747, %v748
        %v750 = vand.u32 %v749, 4294901760
        %751 = vmatpush.msra.mxu0 %v750
        %v752 = vand.u32 %v688, 4294901760
        %v753 = vsub.f32 %v688, %v752
        %v754 = vand.u32 %v753, 4294901760
        %v755 = vsub.f32 %v753, %v754
        %v756 = vand.u32 %v755, 4294901760
        %757 = vmatpush.msra.mxu0 %v756
        %v758 = vand.u32 %v682, 4294901760
        %v759 = vsub.f32 %v682, %v758
        %v760 = vand.u32 %v759, 4294901760
        %v761 = vsub.f32 %v759, %v760
        %v762 = vand.u32 %v761, 4294901760
        %763 = vmatpush.msra.mxu0 %v762
        %v764 = vand.u32 %v674, 4294901760
        %v765 = vsub.f32 %v674, %v764
        %v766 = vand.u32 %v765, 4294901760
        %v767 = vsub.f32 %v765, %v766
        %v768 = vand.u32 %v767, 4294901760
        %769 = vmatpush.msra.mxu0 %v768
        %v770 = vand.u32 %v642, 4294901760
        %v771 = vsub.f32 %v642, %v770
        %v772 = vand.u32 %v771, 4294901760
        %v773 = vsub.f32 %v771, %v772
        %v774 = vand.u32 %v773, 4294901760
        %775 = vmatpush.msra.mxu0 %v774
        %v776 = vand.u32 %v668, 4294901760
        %v777 = vsub.f32 %v668, %v776
        %v778 = vand.u32 %v777, 4294901760
        %v779 = vsub.f32 %v777, %v778
        %v780 = vand.u32 %v779, 4294901760
        %781 = vmatpush.msra.mxu0 %v780
        %v782 = vand.u32 %v663, 4294901760
        %v783 = vsub.f32 %v663, %v782
        %v784 = vand.u32 %v783, 4294901760
        %v785 = vsub.f32 %v783, %v784
        %v786 = vand.u32 %v785, 4294901760
        %787 = vmatpush.msra.mxu0 %v786
        %v788 = vand.u32 %v655, 4294901760
        %v789 = vsub.f32 %v655, %v788
        %v790 = vand.u32 %v789, 4294901760
        %v791 = vsub.f32 %v789, %v790
        %v792 = vand.u32 %v791, 4294901760
        %793 = vmatpush.msra.mxu0 %v792
        %v794 = vand.u32 %v650, 4294901760
        %v795 = vsub.f32 %v650, %v794
        %v796 = vand.u32 %v795, 4294901760
        %v797 = vsub.f32 %v795, %v796
        %v798 = vand.u32 %v797, 4294901760
        %799 = vmatpush.msra.mxu0 %v798
        %v800 = vand.u32 %v703, 4294901760
        %801 = vmatmul.f32.gmra.mxu0 %v800
        %v802 = vpop.f32.mrf.mxu0
        %v803 = vadd.f32 %v737, %v802
        %804 = vdwg.mxu0
        %805 = vmatpush.msra.mxu0 0.0
        %806 = vmatpush.msra.mxu0 0.0
        %807 = vmatpush.msra.mxu0 0.0
        %808 = vmatpush.msra.mxu0 0.0
        %809 = vmatpush.msra.mxu0 0.0
        %810 = vmatpush.msra.mxu0 0.0
        %811 = vmatpush.msra.mxu0 0.0
        %v812 = vand.u32 %v695, 4294901760
        %v813 = vsub.f32 %v695, %v812
        %814 = vmatpush.msra.mxu0 %v813
        %v815 = vand.u32 %v688, 4294901760
        %v816 = vsub.f32 %v688, %v815
        %817 = vmatpush.msra.mxu0 %v816
        %v818 = vand.u32 %v682, 4294901760
        %v819 = vsub.f32 %v682, %v818
        %820 = vmatpush.msra.mxu0 %v819
        %v821 = vand.u32 %v674, 4294901760
        %v822 = vsub.f32 %v674, %v821
        %823 = vmatpush.msra.mxu0 %v822
        %v824 = vand.u32 %v642, 4294901760
        %v825 = vsub.f32 %v642, %v824
        %826 = vmatpush.msra.mxu0 %v825
        %v827 = vand.u32 %v668, 4294901760
        %v828 = vsub.f32 %v668, %v827
        %829 = vmatpush.msra.mxu0 %v828
        %v830 = vand.u32 %v663, 4294901760
        %v831 = vsub.f32 %v663, %v830
        %832 = vmatpush.msra.mxu0 %v831
        %v833 = vand.u32 %v655, 4294901760
        %v834 = vsub.f32 %v655, %v833
        %835 = vmatpush.msra.mxu0 %v834
        %v836 = vand.u32 %v650, 4294901760
        %v837 = vsub.f32 %v650, %v836
        %838 = vmatpush.msra.mxu0 %v837
        %v839 = vand.u32 %v703, 4294901760
        %v840 = vsub.f32 %v703, %v839
        %841 = vmatmul.f32.gmra.mxu0 %v840
        %v842 = vpop.f32.mrf.mxu0
        %v843 = vadd.f32 %v803, %v842
        %844 = vdwg.mxu0
        %845 = vmatpush.msra.mxu0 0.0
        %846 = vmatpush.msra.mxu0 0.0
        %847 = vmatpush.msra.mxu0 0.0
        %848 = vmatpush.msra.mxu0 0.0
        %849 = vmatpush.msra.mxu0 0.0
        %850 = vmatpush.msra.mxu0 0.0
        %851 = vmatpush.msra.mxu0 0.0
        %v852 = vand.u32 %v695, 4294901760
        %853 = vmatpush.msra.mxu0 %v852
        %v854 = vand.u32 %v688, 4294901760
        %855 = vmatpush.msra.mxu0 %v854
        %v856 = vand.u32 %v682, 4294901760
        %857 = vmatpush.msra.mxu0 %v856
        %v858 = vand.u32 %v674, 4294901760
        %859 = vmatpush.msra.mxu0 %v858
        %v860 = vand.u32 %v642, 4294901760
        %861 = vmatpush.msra.mxu0 %v860
        %v862 = vand.u32 %v668, 4294901760
        %863 = vmatpush.msra.mxu0 %v862
        %v864 = vand.u32 %v663, 4294901760
        %865 = vmatpush.msra.mxu0 %v864
        %v866 = vand.u32 %v655, 4294901760
        %867 = vmatpush.msra.mxu0 %v866
        %v868 = vand.u32 %v650, 4294901760
        %869 = vmatpush.msra.mxu0 %v868
        %v870 = vand.u32 %v703, 4294901760
        %v871 = vsub.f32 %v703, %v870
        %v872 = vand.u32 %v871, 4294901760
        %873 = vmatmul.f32.gmra.mxu0 %v872
        %v874 = vpop.f32.mrf.mxu0
        %v875 = vadd.f32 %v843, %v874
        %876 = vdwg.mxu0
        %877 = vmatpush.msra.mxu0 0.0
        %878 = vmatpush.msra.mxu0 0.0
        %879 = vmatpush.msra.mxu0 0.0
        %880 = vmatpush.msra.mxu0 0.0
        %881 = vmatpush.msra.mxu0 0.0
        %882 = vmatpush.msra.mxu0 0.0
        %883 = vmatpush.msra.mxu0 0.0
        %v884 = vand.u32 %v695, 4294901760
        %v885 = vsub.f32 %v695, %v884
        %v886 = vand.u32 %v885, 4294901760
        %887 = vmatpush.msra.mxu0 %v886
        %v888 = vand.u32 %v688, 4294901760
        %v889 = vsub.f32 %v688, %v888
        %v890 = vand.u32 %v889, 4294901760
        %891 = vmatpush.msra.mxu0 %v890
        %v892 = vand.u32 %v682, 4294901760
        %v893 = vsub.f32 %v682, %v892
        %v894 = vand.u32 %v893, 4294901760
        %895 = vmatpush.msra.mxu0 %v894
        %v896 = vand.u32 %v674, 4294901760
        %v897 = vsub.f32 %v674, %v896
        %v898 = vand.u32 %v897, 4294901760
        %899 = vmatpush.msra.mxu0 %v898
        %v900 = vand.u32 %v642, 4294901760
        %v901 = vsub.f32 %v642, %v900
        %v902 = vand.u32 %v901, 4294901760
        %903 = vmatpush.msra.mxu0 %v902
        %v904 = vand.u32 %v668, 4294901760
        %v905 = vsub.f32 %v668, %v904
        %v906 = vand.u32 %v905, 4294901760
        %907 = vmatpush.msra.mxu0 %v906
        %v908 = vand.u32 %v663, 4294901760
        %v909 = vsub.f32 %v663, %v908
        %v910 = vand.u32 %v909, 4294901760
        %911 = vmatpush.msra.mxu0 %v910
        %v912 = vand.u32 %v655, 4294901760
        %v913 = vsub.f32 %v655, %v912
        %v914 = vand.u32 %v913, 4294901760
        %915 = vmatpush.msra.mxu0 %v914
        %v916 = vand.u32 %v650, 4294901760
        %v917 = vsub.f32 %v650, %v916
        %v918 = vand.u32 %v917, 4294901760
        %919 = vmatpush.msra.mxu0 %v918
        %v920 = vand.u32 %v703, 4294901760
        %921 = vmatmul.f32.gmra.mxu0 %v920
        %v922 = vpop.f32.mrf.mxu0
        %v923 = vadd.f32 %v875, %v922
        %924 = vdwg.mxu0
        %925 = vmatpush.msra.mxu0 0.0
        %926 = vmatpush.msra.mxu0 0.0
        %927 = vmatpush.msra.mxu0 0.0
        %928 = vmatpush.msra.mxu0 0.0
        %929 = vmatpush.msra.mxu0 0.0
        %930 = vmatpush.msra.mxu0 0.0
        %931 = vmatpush.msra.mxu0 0.0
        %v932 = vand.u32 %v695, 4294901760
        %933 = vmatpush.msra.mxu0 %v932
        %v934 = vand.u32 %v688, 4294901760
        %935 = vmatpush.msra.mxu0 %v934
        %v936 = vand.u32 %v682, 4294901760
        %937 = vmatpush.msra.mxu0 %v936
        %v938 = vand.u32 %v674, 4294901760
        %939 = vmatpush.msra.mxu0 %v938
        %v940 = vand.u32 %v642, 4294901760
        %941 = vmatpush.msra.mxu0 %v940
        %v942 = vand.u32 %v668, 4294901760
        %943 = vmatpush.msra.mxu0 %v942
        %v944 = vand.u32 %v663, 4294901760
        %945 = vmatpush.msra.mxu0 %v944
        %v946 = vand.u32 %v655, 4294901760
        %947 = vmatpush.msra.mxu0 %v946
        %v948 = vand.u32 %v650, 4294901760
        %949 = vmatpush.msra.mxu0 %v948
        %v950 = vand.u32 %v703, 4294901760
        %951 = vmatmul.f32.gmra.mxu0 %v950
        %v952 = vpop.f32.mrf.mxu0
        %v953 = vadd.f32 %v923, %v952
        %954 = vdwg.mxu0
        %955 = vst.msk [vmem:[%s325] sm:$0xff] %vm394, %v953
        %s956 = sand.u32 %s206, 1
        %s957 = scalar_lea.sflag [#allocation4], %s956
        %s958 = sand.u32 %s206, 1
        %s959 = smul.addr %s958, 8
        %s960 = scalar_lea.vmem [#allocation5], %s959
        // Predicated region
        $region57: #{tpu_custom_call.1} parent=51 // pred_check
          %p961 = pneg %p216
        $region58: #{tpu_custom_call.1} parent=51 // pred_check_branch
          %963 = sbr.rel (%p961) target = $region60
        $region59: #{tpu_custom_call.1} parent=51 // pred_region
          %965 = vsyncadd %s957, 0
          %s966 = smul.addr %s25, 8
          %s967 = scalar_lea.hbm %s8, %s966
          %s969 = sshll.u32 %s960, 4
          %s970 = int_to_ptr.vmem [resolvable:$true] %s969
          %s971 = sshll.u32 %s967, 4
          %s972 = int_to_ptr.hbm [resolvable:$true] %s971
          %974 = dma.vmem_to_hbm [thread:$0]  %s970, 128, %s972, %s957
        $region60: #{tpu_custom_call.1} parent=51 // pred_fallthru
          _
      $region52: #{tpu_custom_call.1} parent=5 // pred_fallthru
        _
      %p975 = scmp.le.s32.totalorder 2, %s20
      // Predicated region
      $region61: #{tpu_custom_call.1} parent=5 // pred_check
        %p976 = pneg %p975
      $region62: #{tpu_custom_call.1} parent=5 // pred_check_branch
        %978 = sbr.rel (%p976) target = $region64
      $region63: #{tpu_custom_call.1} parent=5 // pred_region
        %s979 = ssub.s32 %s20, 2
        // Predicated region
        $region65: #{tpu_custom_call.1} parent=63 // pred_check
          %p980 = pneg %p222
        $region66: #{tpu_custom_call.1} parent=63 // pred_check_branch
          %982 = sbr.rel (%p980) target = $region68
        $region67: #{tpu_custom_call.1} parent=63 // pred_region
          %s983 = sand.u32 %s207, 1
          %s984 = scalar_lea.sflag [#allocation4], %s983
          %s985 = sand.u32 %s207, 1
          %s986 = smul.addr %s985, 8
          %s987 = scalar_lea.vmem [#allocation5], %s986
          %989 = dma.done %s984, 128
        $region68: #{tpu_custom_call.1} parent=63 // pred_fallthru
          _
      $region64: #{tpu_custom_call.1} parent=5 // pred_fallthru
        _
    $region6: #{tpu_custom_call.1} parent=1 // loop_footer
      %s24 = sadd.s32 1, %s20
    $region7: #{tpu_custom_call.1} parent=1 // loop_footer_branch
      %19 = sbr.rel target = $region3
    $region8: #{tpu_custom_call.1} parent=1 // loop_exit
      _
    %990 = vsyncpa [#allocation3], 1
    %s991 = scalar_lea.sflag [#allocation3], 1
    %992 = vsyncpa %s991, 1
    %993 = vsyncpa [#allocation4], 1
    %s994 = scalar_lea.sflag [#allocation4], 1
    %995 = vsyncpa %s994, 1

</llo_original>
